<compile_context>
chip_gen: v7x
topology: tpu7x:2x2x1
jax: 0.10.0
libtpu: 0.0.40
codegen_flags: <defaults>
</compile_context>

<pallas_src>
import jax
import jax.numpy as jnp
import numpy as np
from jax.experimental import pallas as pl
from jax.experimental.pallas import tpu as pltpu


def _identity_kernel(x_ref, o_ref):
    # Pure pass-through: copy the current VMEM tile to the (aliased) output tile.
    o_ref[...] = x_ref[...]


_TARGET_BLOCK_BYTES = 4 * 1024 * 1024   # ~4 MiB per block (near HBM roofline)
_VMEM_LIMIT_BYTES = 32 * 1024 * 1024    # 4 double-buffered 4 MiB blocks + headroom;
                                        # safe on v5e/v6e (128 MiB phys) and v7x (64 MiB)
_LANE_CANDIDATES = (4096, 2048, 1024, 512, 256, 128)


def _identity_pallas_2d(x2d, tile_rows):
    """Identity copy of a 2D array via a tiled, input-aliased Pallas kernel."""
    rows, lanes = x2d.shape
    itemsize = x2d.dtype.itemsize
    grid = (pl.cdiv(rows, tile_rows),)
    return pl.pallas_call(
        _identity_kernel,
        out_shape=jax.ShapeDtypeStruct((rows, lanes), x2d.dtype),
        grid_spec=pltpu.PrefetchScalarGridSpec(
            num_scalar_prefetch=0,
            grid=grid,
            in_specs=[pl.BlockSpec((tile_rows, lanes), lambda i: (i, 0))],
            out_specs=pl.BlockSpec((tile_rows, lanes), lambda i: (i, 0)),
        ),
        # Identity op: let the output alias the input HBM buffer.
        input_output_aliases={0: 0},
        compiler_params=pltpu.CompilerParams(
            dimension_semantics=("parallel",),   # shards grid across TCs on v7x
            vmem_limit_bytes=_VMEM_LIMIT_BYTES,
        ),
        cost_estimate=pl.CostEstimate(
            flops=0,
            transcendentals=0,
            bytes_accessed=2 * rows * lanes * itemsize,
        ),
    )(x2d)


def print_layer_forward(x):
    """Pallas equivalent of PrintLayer.forward: print shape, return x.

    NOTE: the print fires host-side at trace/call time (shapes are static in
    JAX); under jax.jit it will not re-print on every execution, unlike the
    per-forward print of the PyTorch module.
    """
    print(tuple(x.shape))

    n = x.size
    if n == 0:
        return x
    itemsize = x.dtype.itemsize

    # Lane-dense path: pick the widest multiple-of-128 lane width that evenly
    # divides the flat size.  Reshape of a contiguous array is free — no
    # padding, concatenation, or trailing slice.
    lanes = next((c for c in _LANE_CANDIDATES if n % c == 0), 0)
    if lanes:
        rows = n // lanes
        row_bytes = lanes * itemsize
        tile_rows = max(8, (_TARGET_BLOCK_BYTES // row_bytes) // 8 * 8)
        if tile_rows >= rows:
            tile_rows = rows  # full extent: exempt from the 8-sublane rule
        y2d = _identity_pallas_2d(x.reshape(rows, lanes), tile_rows)
        return y2d.reshape(x.shape)

    # Rare remainder: flat size has no 128-divisible factorization.
    if n * itemsize <= 8 * 1024 * 1024:
        # Single whole-array block; last two block dims equal the full array
        # dims, so the (8, 128) divisibility rule does not apply.
        y2d = _identity_pallas_2d(x.reshape(1, n), tile_rows=1)
        return y2d.reshape(x.shape)

    # Huge, oddly-sized tensor: identity needs no data movement at all.
    # TODO(synk): if an explicit copy is ever required here, tile the leading
    # dim with full trailing extents instead of padding.
    return x


if __name__ == "__main__":
    key = jax.random.PRNGKey(0)
    # Small NCHW input consistent with a conv-net intermediate: (B, C, H, W)
    x = jax.random.normal(key, (2, 4, 16, 16), dtype=jnp.float32)

    # Snapshot to host before calling: the kernel's output aliases its input
    # HBM buffer, so don't rely on the device copy of `x` after the call.
    x_host = np.asarray(jax.device_get(x))

    y = print_layer_forward(x)
    y = jax.block_until_ready(y)

    assert y.shape == x_host.shape and y.dtype == x_host.dtype
    assert np.array_equal(np.asarray(jax.device_get(y)), x_host)
    print("KERNEL_OK")
</pallas_src>

<mosaic_0001>
module attributes {stable_mosaic.version = 11 : i64} {
  func.func @_identity_kernel(%arg0: i32, %arg1: memref<1x2048xf32, #tpu.memory_space<vmem>>, %arg2: memref<1x2048xf32, #tpu.memory_space<vmem>>) attributes {dimension_semantics = [#tpu.dimension_semantics<parallel>], iteration_bounds = array<i64: 1>, scalar_prefetch = 0 : i64, scratch_operands = 0 : i64, tpu.core_type = #tpu.core_type<tc>, window_params = [{transform_indices = @transform_0, window_bounds = array<i64: 1, 2048>}, {transform_indices = @transform_1, window_bounds = array<i64: 1, 2048>}]} {
    %c0 = arith.constant 0 : index
    %c0_0 = arith.constant 0 : index
    %0 = vector.load %arg1[%c0, %c0_0] : memref<1x2048xf32, #tpu.memory_space<vmem>>, vector<1x2048xf32>
    %c0_1 = arith.constant 0 : index
    %c0_2 = arith.constant 0 : index
    %1 = vector.load %arg2[%c0_1, %c0_2] : memref<1x2048xf32, #tpu.memory_space<vmem>>, vector<1x2048xf32>
    tpu.vector_store %arg2[%c0_1, %c0_2], %0 {strides = array<i32>} : memref<1x2048xf32, #tpu.memory_space<vmem>>, vector<1x2048xf32>,
    return
  }
  func.func @transform_0(%arg0: i32) -> (i32, i32) {
    %c0_i32 = arith.constant 0 : i32
    %c0_i32_0 = arith.constant 0 : i32
    return %arg0, %c0_i32 : i32, i32
  }
  func.func @transform_1(%arg0: i32) -> (i32, i32) {
    %c0_i32 = arith.constant 0 : i32
    %c0_i32_0 = arith.constant 0 : i32
    return %arg0, %c0_i32 : i32, i32
  }
}

</mosaic_0001>

<llo_original>
// kernel: tpu_custom_call.1
$region0: #{tpu_custom_call.1}
  #allocation0 [shape = 'u32[]', space=smem, size = 0x4, offset = 0x4, fixed_abs, tag = 'smem constant byte address 0x4 - core index']
  #allocation1 [shape = 'u32[144,128]{1,0:T(1,128)}', space=vmem, size = 0x12000, scoped, tag = 'internal scratch']
  %s0 = inlined_call_operand.hbm [shape: f32[1,2048], index: 0, kind: input, shape index: {}, may-alias: {0,1}]
  %s1 = inlined_call_operand.hbm [shape: f32[1,2048], index: 1, kind: output, shape index: {}, may-alias: {0,1}]
  %s2 = sld [smem:[#allocation0]]
  $region18: #{tpu_custom_call.1} parent=0
    _
  %s4 = ssub.s32 1, %s2
  %s5 = scalar_select 0, %s4, %s2
  $region1: #{tpu_custom_call.1} parent=0
    #allocation2 [shape = 'u8[8192]{0}', space=vmem, size = 0x2000, scoped, tag = 'input window, operand 0, single buffered']
    #allocation3 [shape = 's32[1]{0}', space=sflag, size = 0x4, scoped, tag = 'scoped memory for tpu_custom_call.1']
    #allocation4 [shape = 's32[1]{0}', space=sflag, size = 0x4, scoped, tag = 'scoped memory for tpu_custom_call.1']
    #allocation5 [shape = 'u8[8192]{0}', space=vmem, size = 0x2000, scoped, tag = 'output window, operand 0, single buffered']
    %6 = vsyncpa [#allocation3], 0
    %7 = vsyncpa [#allocation4], 0
    // Predicated region
    $region2: #{tpu_custom_call.1} parent=1 // pred_check
      _
    $region3: #{tpu_custom_call.1} parent=1 // pred_check_branch
      %9 = sbr.rel (0) target = $region5
    $region4: #{tpu_custom_call.1} parent=1 // pred_region
      %s11 = ssub.s32 256, 256
      %12 = vsyncadd [#allocation3], %s11
      %s14 = sshll.u32 [#allocation2], 4
      %s15 = int_to_ptr.vmem [resolvable:$true] %s14
      %17 = dma.hbm_to_vmem [thread:$0]  %s0, 256, %s15, [#allocation3]
    $region5: #{tpu_custom_call.1} parent=1 // pred_fallthru
      _
    // Predicated region
    $region6: #{tpu_custom_call.1} parent=1 // pred_check
      _
    $region7: #{tpu_custom_call.1} parent=1 // pred_check_branch
      %19 = sbr.rel (0) target = $region9
    $region8: #{tpu_custom_call.1} parent=1 // pred_region
      %20 = dma.done [#allocation3], 256
    $region9: #{tpu_custom_call.1} parent=1 // pred_fallthru
      _
    %v21 = vld [vmem:[#allocation2] sm:$0xff]
    %v22 = vld [vmem:[#allocation2 + $0x8] sm:$0xff]
    %23 = vst [vmem:[#allocation5] sm:$0xff] %v21
    %24 = vst [vmem:[#allocation5 + $0x8] sm:$0xff] %v22
    // Predicated region
    $region10: #{tpu_custom_call.1} parent=1 // pred_check
      _
    $region11: #{tpu_custom_call.1} parent=1 // pred_check_branch
      %26 = sbr.rel (0) target = $region13
    $region12: #{tpu_custom_call.1} parent=1 // pred_region
      %s28 = ssub.s32 256, 256
      %29 = vsyncadd [#allocation4], %s28
      %s31 = sshll.u32 [#allocation5], 4
      %s32 = int_to_ptr.vmem [resolvable:$true] %s31
      %34 = dma.vmem_to_hbm [thread:$0]  %s32, 256, %s1, [#allocation4]
    $region13: #{tpu_custom_call.1} parent=1 // pred_fallthru
      _
    // Predicated region
    $region14: #{tpu_custom_call.1} parent=1 // pred_check
      _
    $region15: #{tpu_custom_call.1} parent=1 // pred_check_branch
      %36 = sbr.rel (0) target = $region17
    $region16: #{tpu_custom_call.1} parent=1 // pred_region
      %37 = dma.done [#allocation4], 256
    $region17: #{tpu_custom_call.1} parent=1 // pred_fallthru
      _
    %38 = vsyncpa [#allocation3], 1
    %39 = vsyncpa [#allocation4], 1

</llo_original>
